<compile_context>
chip_gen: v6e
topology: v6e:2x2x1
jax: 0.10.0
libtpu: 0.0.40
codegen_flags: <defaults>
</compile_context>

<pallas_src>
import math

import jax
import jax.numpy as jnp
from jax.experimental import pallas as pl
from jax.experimental.pallas import tpu as pltpu


# ---- dispatch thresholds ---------------------------------------------------
_MIN_PALLAS_BYTES = 1 << 20        # below this, XLA-fused concatenate wins on
                                   # fixed launch overhead alone
_MIN_DMA_ROW_BYTES = 512           # per-destination-row chunks below ~512 B
                                   # waste strided HBM write bandwidth
_MAX_SPLITS_PER_INPUT = 4          # extra concurrent DMA descriptors per input
_MIN_SPLIT_BYTES = 256 * 1024      # never split a copy into chunks smaller than this
_VMEM_TILE_BYTES = 2 << 20         # output-tile budget for the VMEM fallback
                                   # (sized for v7x 32 MiB scoped VMEM; ~8 MiB
                                   # peak with double buffering)


def _row_splits(outer, row_bytes, n_inputs):
    """Static (row_start, row_end) splits of one input's copy along `outer`."""
    if n_inputs > 3 or outer < 2:
        return ((0, outer),)
    total_bytes = outer * row_bytes
    n = min(_MAX_SPLITS_PER_INPUT, outer, max(1, total_bytes // _MIN_SPLIT_BYTES))
    if n <= 1:
        return ((0, outer),)
    bounds = [(outer * k) // n for k in range(n + 1)]
    return tuple((bounds[k], bounds[k + 1])
                 for k in range(n) if bounds[k + 1] > bounds[k])


def _make_dma_concat_kernel(offsets, sizes, splits, outer):
    """Kernel copying each HBM input into its static slice of the HBM output."""
    n_in = len(sizes)

    def kernel(*refs):
        in_refs = refs[:n_in]
        out_ref = refs[n_in]
        sem = refs[n_in + 1]

        copies = []
        d = 0
        for i, src in enumerate(in_refs):
            lo, hi = offsets[i], offsets[i] + sizes[i]
            for (r0, r1) in splits[i]:
                if r0 == 0 and r1 == outer:
                    src_slc = src
                    dst_slc = out_ref.at[:, lo:hi]
                else:
                    src_slc = src.at[r0:r1, :]
                    dst_slc = out_ref.at[r0:r1, lo:hi]
                cp = pltpu.make_async_copy(src_slc, dst_slc, sem.at[d])
                cp.start()
                copies.append(cp)
                d += 1
        # All descriptors are in flight concurrently; now block on completion.
        for cp in copies:
            cp.wait()

    return kernel


def _make_vmem_concat_kernel(n_in):
    """VMEM-tiled fallback: concatenate lane-wise and write full output rows."""
    def kernel(*refs):
        in_refs = refs[:n_in]
        out_ref = refs[n_in]
        out_ref[...] = jnp.concatenate([r[...] for r in in_refs], axis=-1)
    return kernel


def _dma_concat(xs2d, offsets, sizes, outer, total, dtype):
    itemsize = jnp.dtype(dtype).itemsize
    splits = tuple(_row_splits(outer, s * itemsize, len(xs2d)) for s in sizes)
    n_desc = sum(len(s) for s in splits)
    kernel = _make_dma_concat_kernel(tuple(offsets), tuple(sizes), splits, outer)
    return pl.pallas_call(
        kernel,
        out_shape=jax.ShapeDtypeStruct((outer, total), dtype),
        in_specs=[pl.BlockSpec(memory_space=pl.ANY) for _ in xs2d],
        out_specs=pl.BlockSpec(memory_space=pl.ANY),
        scratch_shapes=[pltpu.SemaphoreType.DMA((n_desc,))],
    )(*xs2d)


def _vmem_concat(xs2d, sizes, outer, total, dtype):
    itemsize = jnp.dtype(dtype).itemsize
    rows = max(1, _VMEM_TILE_BYTES // max(1, total * itemsize))
    if rows >= outer or outer <= 8:
        tile_outer = outer                      # full extent (always legal)
    else:
        tile_outer = max(8, (rows // 8) * 8)    # sublane-aligned tile
    grid = (pl.cdiv(outer, tile_outer),)
    kernel = _make_vmem_concat_kernel(len(xs2d))
    return pl.pallas_call(
        kernel,
        out_shape=jax.ShapeDtypeStruct((outer, total), dtype),
        grid=grid,
        in_specs=[pl.BlockSpec((tile_outer, s), lambda o: (o, 0)) for s in sizes],
        out_specs=pl.BlockSpec((tile_outer, total), lambda o: (o, 0)),
        compiler_params=pltpu.CompilerParams(
            dimension_semantics=("parallel",),
            vmem_limit_bytes=32 << 20),
    )(*xs2d)


def pallas_concat(xs, dim=0, *, force_pallas=False):
    """Concatenate arrays along `dim` (torch.cat semantics) via Pallas DMAs."""
    xs = list(xs)
    if not xs:
        raise ValueError("pallas_concat requires at least one input")
    ndim = xs[0].ndim
    dim = dim % ndim
    dtype = xs[0].dtype
    base = xs[0].shape
    # Same contract as torch.cat: ranks/dtypes match, non-concat dims match.
    for x in xs:
        if x.ndim != ndim or x.dtype != dtype:
            raise ValueError("all inputs must share rank and dtype")
        for ax in range(ndim):
            if ax != dim and x.shape[ax] != base[ax]:
                raise ValueError("non-concat dims must match")

    out_shape = list(base)
    out_shape[dim] = sum(x.shape[dim] for x in xs)
    out_shape = tuple(out_shape)

    # Fast path: a single input needs no kernel at all.
    if len(xs) == 1:
        return xs[0]

    # Inputs that are empty along the concat dim contribute no bytes.
    xs = [x for x in xs if x.shape[dim] > 0]
    if not xs:
        return jnp.zeros(out_shape, dtype)

    itemsize = jnp.dtype(dtype).itemsize
    total_elems = math.prod(out_shape)
    # Fast path: tiny totals are launch-overhead dominated -> XLA-fused concat.
    # TODO(synk): sub-byte packed dtypes (int4) can make DMA byte offsets
    #             misaligned; they should also be routed through this fallback.
    if total_elems == 0 or (not force_pallas
                            and total_elems * itemsize < _MIN_PALLAS_BYTES):
        return jnp.concatenate(xs, axis=dim)

    outer = math.prod(base[:dim]) if dim > 0 else 1
    inner = math.prod(base[dim + 1:]) if dim + 1 < ndim else 1

    # Flatten so the concat axis becomes a contiguous slice of the last dim
    # (row-major reshape is a free bitcast for XLA default layouts).
    xs2d = [x.reshape(outer, x.shape[dim] * inner) for x in xs]
    sizes = [x.shape[dim] * inner for x in xs]
    offsets, off = [], 0
    for s in sizes:
        offsets.append(off)
        off += s
    total = off

    min_row_bytes = min(s * itemsize for s in sizes)
    if outer > 1 and min_row_bytes < _MIN_DMA_ROW_BYTES:
        # Strided HBM writes would fall below the transaction granularity and
        # waste 4-8x write bandwidth -> lane-dense VMEM-tiled fallback.
        out2d = _vmem_concat(xs2d, sizes, outer, total, dtype)
    else:
        # Overlapped HBM->HBM DMA copies at HBM roofline.
        out2d = _dma_concat(xs2d, offsets, sizes, outer, total, dtype)

    return out2d.reshape(out_shape)


class Concat:
    """JAX/Pallas mirror of the PyTorch Concat module."""

    def __init__(self, dim=0):
        self.dim = dim

    def __call__(self, args):
        return pallas_concat(args, self.dim)


if __name__ == "__main__":
    key = jax.random.PRNGKey(0)
    k1, k2, k3 = jax.random.split(key, 3)

    # Typical YOLO usage: concat feature maps along channel axis (dim=1), NCHW.
    x1 = jax.random.normal(k1, (2, 4, 16, 16), dtype=jnp.float32)
    x2 = jax.random.normal(k2, (2, 6, 16, 16), dtype=jnp.float32)
    x3 = jax.random.normal(k3, (2, 2, 16, 16), dtype=jnp.float32)

    # Module-level path (small totals take the XLA-fused fast path).
    concat = Concat(dim=1)
    out = jax.block_until_ready(concat((x1, x2, x3)))
    ref = jnp.concatenate([x1, x2, x3], axis=1)
    assert out.shape == ref.shape and out.dtype == ref.dtype
    assert jnp.array_equal(out, ref)

    # Force the Pallas overlapped-DMA path (per-row chunks >= 512 B here).
    out_dma = jax.block_until_ready(
        pallas_concat((x1, x2, x3), dim=1, force_pallas=True))
    assert jnp.array_equal(out_dma, ref)

    # dim=0: outer == 1, each copy fully contiguous -> DMA path.
    out0 = jax.block_until_ready(
        pallas_concat((x1, x1), dim=0, force_pallas=True))
    assert jnp.array_equal(out0, jnp.concatenate([x1, x1], axis=0))

    # dim=-1: per-destination-row chunks are 64 B -> VMEM-tiled fallback path.
    outm = jax.block_until_ready(
        pallas_concat((x1, x1), dim=-1, force_pallas=True))
    assert jnp.array_equal(outm, jnp.concatenate([x1, x1], axis=-1))

    # Single-input fast path.
    assert jnp.array_equal(Concat(dim=2)((x1,)), x1)

    print("KERNEL_OK")
</pallas_src>

<mosaic_0001>
module attributes {stable_mosaic.version = 11 : i64} {
  func.func @kernel(%arg0: memref<2x1024xf32, #tpu.memory_space<any>>, %arg1: memref<2x1536xf32, #tpu.memory_space<any>>, %arg2: memref<2x512xf32, #tpu.memory_space<any>>, %arg3: memref<2x3072xf32, #tpu.memory_space<any>>, %arg4: memref<3x!tpu.dma_semaphore, #tpu.memory_space<semaphore_mem>>) attributes {dimension_semantics = [], scalar_prefetch = 0 : i64, scratch_operands = 1 : i64, tpu.core_type = #tpu.core_type<tc>} {
    %c0_i32 = arith.constant 0 : i32
    %c0_i32_0 = arith.constant 0 : i32
    %c0_i32_1 = arith.constant 0 : i32
    %0 = tpu.memref_slice %arg3[%c0_i32_0, %c0_i32_1] : memref<2x3072xf32, #tpu.memory_space<any>> -> memref<2x1024xf32, #tpu.memory_space<any>>
    %1 = tpu.memref_slice %arg4[%c0_i32] : memref<3x!tpu.dma_semaphore, #tpu.memory_space<semaphore_mem>> -> memref<1x!tpu.dma_semaphore, #tpu.memory_space<semaphore_mem>>
    %2 = tpu.memref_squeeze %1 : memref<1x!tpu.dma_semaphore, #tpu.memory_space<semaphore_mem>> -> memref<!tpu.dma_semaphore, #tpu.memory_space<semaphore_mem>>
    tpu.enqueue_dma source(%arg0 : memref<2x1024xf32, #tpu.memory_space<any>>) target(%0 : memref<2x1024xf32, #tpu.memory_space<any>>) target_semaphore(%2 : memref<!tpu.dma_semaphore, #tpu.memory_space<semaphore_mem>>)
    %c1_i32 = arith.constant 1 : i32
    %c0_i32_2 = arith.constant 0 : i32
    %c1024_i32 = arith.constant 1024 : i32
    %3 = tpu.memref_slice %arg3[%c0_i32_2, %c1024_i32] : memref<2x3072xf32, #tpu.memory_space<any>> -> memref<2x1536xf32, #tpu.memory_space<any>>
    %4 = tpu.memref_slice %arg4[%c1_i32] : memref<3x!tpu.dma_semaphore, #tpu.memory_space<semaphore_mem>> -> memref<1x!tpu.dma_semaphore, #tpu.memory_space<semaphore_mem>>
    %5 = tpu.memref_squeeze %4 : memref<1x!tpu.dma_semaphore, #tpu.memory_space<semaphore_mem>> -> memref<!tpu.dma_semaphore, #tpu.memory_space<semaphore_mem>>
    tpu.enqueue_dma source(%arg1 : memref<2x1536xf32, #tpu.memory_space<any>>) target(%3 : memref<2x1536xf32, #tpu.memory_space<any>>) target_semaphore(%5 : memref<!tpu.dma_semaphore, #tpu.memory_space<semaphore_mem>>)
    %c2_i32 = arith.constant 2 : i32
    %c0_i32_3 = arith.constant 0 : i32
    %c2560_i32 = arith.constant 2560 : i32
    %6 = tpu.memref_slice %arg3[%c0_i32_3, %c2560_i32] : memref<2x3072xf32, #tpu.memory_space<any>> -> memref<2x512xf32, #tpu.memory_space<any>>
    %7 = tpu.memref_slice %arg4[%c2_i32] : memref<3x!tpu.dma_semaphore, #tpu.memory_space<semaphore_mem>> -> memref<1x!tpu.dma_semaphore, #tpu.memory_space<semaphore_mem>>
    %8 = tpu.memref_squeeze %7 : memref<1x!tpu.dma_semaphore, #tpu.memory_space<semaphore_mem>> -> memref<!tpu.dma_semaphore, #tpu.memory_space<semaphore_mem>>
    tpu.enqueue_dma source(%arg2 : memref<2x512xf32, #tpu.memory_space<any>>) target(%6 : memref<2x512xf32, #tpu.memory_space<any>>) target_semaphore(%8 : memref<!tpu.dma_semaphore, #tpu.memory_space<semaphore_mem>>)
    %c0_i32_4 = arith.constant 0 : i32
    %c0_i32_5 = arith.constant 0 : i32
    %c0_i32_6 = arith.constant 0 : i32
    %9 = tpu.memref_slice %arg3[%c0_i32_5, %c0_i32_6] : memref<2x3072xf32, #tpu.memory_space<any>> -> memref<2x1024xf32, #tpu.memory_space<any>>
    %10 = tpu.memref_slice %arg4[%c0_i32_4] : memref<3x!tpu.dma_semaphore, #tpu.memory_space<semaphore_mem>> -> memref<1x!tpu.dma_semaphore, #tpu.memory_space<semaphore_mem>>
    %11 = tpu.memref_squeeze %10 : memref<1x!tpu.dma_semaphore, #tpu.memory_space<semaphore_mem>> -> memref<!tpu.dma_semaphore, #tpu.memory_space<semaphore_mem>>
    tpu.wait_dma2 semaphore(%11 : memref<!tpu.dma_semaphore, #tpu.memory_space<semaphore_mem>>) src(%arg0 : memref<2x1024xf32, #tpu.memory_space<any>>) dst(%9 : memref<2x1024xf32, #tpu.memory_space<any>>)
    %c1_i32_7 = arith.constant 1 : i32
    %c0_i32_8 = arith.constant 0 : i32
    %c1024_i32_9 = arith.constant 1024 : i32
    %12 = tpu.memref_slice %arg3[%c0_i32_8, %c1024_i32_9] : memref<2x3072xf32, #tpu.memory_space<any>> -> memref<2x1536xf32, #tpu.memory_space<any>>
    %13 = tpu.memref_slice %arg4[%c1_i32_7] : memref<3x!tpu.dma_semaphore, #tpu.memory_space<semaphore_mem>> -> memref<1x!tpu.dma_semaphore, #tpu.memory_space<semaphore_mem>>
    %14 = tpu.memref_squeeze %13 : memref<1x!tpu.dma_semaphore, #tpu.memory_space<semaphore_mem>> -> memref<!tpu.dma_semaphore, #tpu.memory_space<semaphore_mem>>
    tpu.wait_dma2 semaphore(%14 : memref<!tpu.dma_semaphore, #tpu.memory_space<semaphore_mem>>) src(%arg1 : memref<2x1536xf32, #tpu.memory_space<any>>) dst(%12 : memref<2x1536xf32, #tpu.memory_space<any>>)
    %c2_i32_10 = arith.constant 2 : i32
    %c0_i32_11 = arith.constant 0 : i32
    %c2560_i32_12 = arith.constant 2560 : i32
    %15 = tpu.memref_slice %arg3[%c0_i32_11, %c2560_i32_12] : memref<2x3072xf32, #tpu.memory_space<any>> -> memref<2x512xf32, #tpu.memory_space<any>>
    %16 = tpu.memref_slice %arg4[%c2_i32_10] : memref<3x!tpu.dma_semaphore, #tpu.memory_space<semaphore_mem>> -> memref<1x!tpu.dma_semaphore, #tpu.memory_space<semaphore_mem>>
    %17 = tpu.memref_squeeze %16 : memref<1x!tpu.dma_semaphore, #tpu.memory_space<semaphore_mem>> -> memref<!tpu.dma_semaphore, #tpu.memory_space<semaphore_mem>>
    tpu.wait_dma2 semaphore(%17 : memref<!tpu.dma_semaphore, #tpu.memory_space<semaphore_mem>>) src(%arg2 : memref<2x512xf32, #tpu.memory_space<any>>) dst(%15 : memref<2x512xf32, #tpu.memory_space<any>>)
    return
  }
}

</mosaic_0001>

<llo_original>
// kernel: tpu_custom_call.1
$region0: #{tpu_custom_call.1}
  #allocation0 [shape = 'u32[]', space=smem, size = 0x4, offset = 0x4, fixed_abs, tag = 'smem constant byte address 0x4 - core index']
  #allocation1 [shape = 'u32[144,128]{1,0:T(1,128)}', space=vmem, size = 0x12000, scoped, tag = 'internal scratch']
  #allocation2 [shape = 's32[3]{0}', space=sflag, size = 0xc, scoped, tag = 'scratch operand']
  #allocation3 [shape = 's32[]', space=sflag, size = 0x4, offset = 0, fixed_abs, tag = 'sflag constant byte address 0x0 - dummy sync flag']
  #allocation4 [shape = 'u32[0]{0}', space=smem, size = 0, offset = 0, fixed_abs, tag = 'smem constant byte address 0x0 - null']
  #allocation5 [shape = 's32[]', space=sflag, size = 0x4, offset = 0, fixed_abs, tag = 'sflag constant byte address 0x0 - dummy sync flag']
  #allocation6 [shape = 'u32[0]{0}', space=smem, size = 0, offset = 0, fixed_abs, tag = 'smem constant byte address 0x0 - null']
  #allocation7 [shape = 's32[]', space=sflag, size = 0x4, offset = 0, fixed_abs, tag = 'sflag constant byte address 0x0 - dummy sync flag']
  #allocation8 [shape = 'u32[0]{0}', space=smem, size = 0, offset = 0, fixed_abs, tag = 'smem constant byte address 0x0 - null']
  %s0 = inlined_call_operand.hbm [shape: f32[2,1024], index: 0, kind: input, shape index: {}]
  %s1 = inlined_call_operand.hbm [shape: f32[2,1536], index: 1, kind: input, shape index: {}]
  %s2 = inlined_call_operand.hbm [shape: f32[2,512], index: 2, kind: input, shape index: {}]
  %s3 = inlined_call_operand.hbm [shape: f32[2,3072], index: 3, kind: output, shape index: {}]
  %s4 = sld [smem:[#allocation0]]
  $region2: #{tpu_custom_call.1} parent=0
    _
  %s6 = ssub.s32 1, %s4
  %s7 = scalar_select 0, %s6, %s4
  %s9 = sshll.u32 1, 14
  %s10 = sxor.u32 4294967295, %s9
  %14 = dma.general %s0, 256, %s3, [#allocation2], 131072, [#allocation4], 0, 0
  %s15 = scalar_lea.hbm %s3, 256
  %s16 = scalar_lea.sflag [#allocation2], 1
  %s18 = sshll.u32 1, 14
  %s19 = sxor.u32 4294967295, %s18
  %23 = dma.general %s1, 384, %s15, %s16, 131072, [#allocation6], 0, 0
  %s24 = scalar_lea.hbm %s3, 640
  %s25 = scalar_lea.sflag [#allocation2], 2
  %s27 = sshll.u32 1, 14
  %s28 = sxor.u32 4294967295, %s27
  %32 = dma.general %s2, 128, %s24, %s25, 131072, [#allocation8], 0, 0
  %s33 = smul.u32 2, 1
  %s34 = smul.u32 %s33, 8
  %s35 = sshll.u32 %s34, 4
  %36 = dma.done [#allocation2], %s35
  %s37 = smul.u32 %s33, 12
  %s38 = sshll.u32 %s37, 4
  %39 = dma.done %s16, %s38
  %s40 = smul.u32 %s33, 4
  %s41 = sshll.u32 %s40, 4
  %42 = dma.done %s25, %s41
  %43 = vsyncmov [#allocation2]
  %s44 = vpop.sfrf %43
  %p45 = scmp.eq.s32.totalorder %s44, 0
  %p46 = pneg %p45
  %48 = shalt.err (%p46)
  %s49 = scalar_lea.sflag [#allocation2], 1
  %50 = vsyncmov %s49
  %s51 = vpop.sfrf %50
  %p52 = scmp.eq.s32.totalorder %s51, 0
  %p53 = pneg %p52
  %55 = shalt.err (%p53)
  %s56 = scalar_lea.sflag [#allocation2], 2
  %57 = vsyncmov %s56
  %s58 = vpop.sfrf %57
  %p59 = scmp.eq.s32.totalorder %s58, 0
  %p60 = pneg %p59
  %62 = shalt.err (%p60)

</llo_original>
